<compile_context>
chip_gen: v5e
topology: v5e:2x2
jax: 0.10.0
libtpu: 0.0.40
codegen_flags: <defaults>
</compile_context>

<pallas_src>
import functools

import jax
import jax.numpy as jnp
from jax import lax
from jax.experimental import pallas as pl
from jax.experimental.pallas import tpu as pltpu

IN_FEATURES = 50  # fixed by the module definition (nn.Linear(50, E))


def _cdiv(a, b):
    return -(-a // b)


def _round_up(a, m):
    return _cdiv(a, m) * m


def _mlp_kernel(x_ref, w1_ref, b1_ref, w2_ref, b2_ref, w3_ref, b3_ref, o_ref):
    """Fused MLP.  x arrives batch-major, intermediates are feature-major.

    x_ref  : (TB, 50)  natural-layout input tile
    w1_ref : (E, 50)   fc1.weight  (PyTorch (out, in) layout)
    b1_ref : (E, 1)
    w2_ref : (E, E)    fc2.weight
    b2_ref : (E, 1)
    w3_ref : (E, 1)    fc3.weight^T
    b3_ref : (1, 1)    fc3.bias (SMEM scalar)
    o_ref  : (1, TB)   squared output, lane-dense (batch on lanes)
    """
    # h1^T = W1 @ x^T: contract the 50-feature axis of both operands so the
    # (E, TB) intermediate lands feature-major (batch on the 128-wide lanes)
    # without any wrapper-side transpose of x.
    h1 = lax.dot_general(
        w1_ref[...], x_ref[...],
        dimension_numbers=(((1,), (1,)), ((), ())),
        preferred_element_type=jnp.float32)                                # (E, TB)
    h1 = jnp.maximum(h1 + b1_ref[...], 0.0)                                # ReLU (VPU)
    h2 = jnp.dot(w2_ref[...], h1, preferred_element_type=jnp.float32)      # (E, TB)
    h2 = jnp.maximum(h2 + b2_ref[...], 0.0)                                # ReLU (VPU)
    # fc3 (E -> 1): VPU multiply + XLU sublane reduce; result is already a
    # lane-dense (1, TB) row, so the store is a full-width unmasked vst.
    h3 = jnp.sum(h2 * w3_ref[...], axis=0, keepdims=True) + b3_ref[0, 0]   # (1, TB)
    o_ref[...] = jnp.square(h3)


def _pick_batch_tile(batch, block_b):
    """Batch-tile size: big enough to amortise grid-step overhead, a multiple of
    128 (lane dim of the output) when tiled, and >= 2 tiles for large batches so
    the 'parallel' grid axis can shard across both TensorCores on v7x."""
    block_b = max(128, _round_up(block_b, 128))
    if batch <= 256:
        return batch                      # single full-array block
    num_tiles = max(2, _cdiv(batch, block_b))
    return min(block_b, _round_up(_cdiv(batch, num_tiles), 128))


@functools.partial(jax.jit, static_argnames=("block_b",))
def natural_language_scaling_model(x, w1, b1, w2, b2, w3, b3, *, block_b=8192):
    """Forward pass of NaturalLanguageScalingModel.

    x  : (B, 50) float32
    w1 : (E, 50), b1 : (E,)   -- PyTorch nn.Linear parameter layouts
    w2 : (E, E),  b2 : (E,)
    w3 : (1, E),  b3 : (1,)
    returns: (B, 1) float32
    """
    B, F = x.shape
    assert F == IN_FEATURES
    E = w1.shape[0]

    tb = _pick_batch_tile(B, block_b)
    num_tiles = _cdiv(B, tb)

    b1c = b1.reshape(E, 1)
    b2c = b2.reshape(E, 1)
    w3c = w3.reshape(E, 1)                              # fc3.weight^T
    b3c = b3.reshape(1, 1)

    weight_bytes = (E * F + E * E + 3 * E + 1) * 4
    cost = pl.CostEstimate(
        flops=2 * B * (F * E + E * E + E),
        transcendentals=0,
        bytes_accessed=B * (F + 1) * 4 + weight_bytes,
    )

    out = pl.pallas_call(
        _mlp_kernel,
        out_shape=jax.ShapeDtypeStruct((1, B), jnp.float32),
        grid_spec=pltpu.PrefetchScalarGridSpec(
            num_scalar_prefetch=0,
            grid=(num_tiles,),
            in_specs=[
                pl.BlockSpec((tb, F), lambda i: (i, 0)),            # x tile (streamed)
                pl.BlockSpec((E, F), lambda i: (0, 0)),             # w1 (resident)
                pl.BlockSpec((E, 1), lambda i: (0, 0)),             # b1
                pl.BlockSpec((E, E), lambda i: (0, 0)),             # w2
                pl.BlockSpec((E, 1), lambda i: (0, 0)),             # b2
                pl.BlockSpec((E, 1), lambda i: (0, 0)),             # w3^T
                pl.BlockSpec(memory_space=pltpu.MemorySpace.SMEM),  # b3 scalar
            ],
            out_specs=pl.BlockSpec((1, tb), lambda i: (0, i)),
        ),
        compiler_params=pltpu.CompilerParams(
            dimension_semantics=("parallel",),
            vmem_limit_bytes=32 * 1024 * 1024,
        ),
        cost_estimate=cost,
    )(x, w1, b1c, w2, b2c, w3c, b3c)

    return out.reshape(B, 1)


if __name__ == "__main__":
    embedding_size = 32

    key = jax.random.PRNGKey(0)
    kx, k1w, k1b, k2w, k2b, k3w, k3b = jax.random.split(key, 7)

    def init_linear(kw, kb, fan_in, fan_out):
        # PyTorch-style init: U(-1/sqrt(fan_in), 1/sqrt(fan_in)), weight (out, in).
        bound = 1.0 / float(fan_in) ** 0.5
        w = jax.random.uniform(kw, (fan_out, fan_in), jnp.float32, -bound, bound)
        b = jax.random.uniform(kb, (fan_out,), jnp.float32, -bound, bound)
        return w, b

    w1, b1 = init_linear(k1w, k1b, IN_FEATURES, embedding_size)
    w2, b2 = init_linear(k2w, k2b, embedding_size, embedding_size)
    w3, b3 = init_linear(k3w, k3b, embedding_size, 1)

    def reference(x):
        # Pure-JAX reference of the PyTorch forward pass.
        h1 = jnp.maximum(x @ w1.T + b1, 0.0)
        h2 = jnp.maximum(h1 @ w2.T + b2, 0.0)
        return jnp.square(h2 @ w3.T + b3)

    # batch=8 exercises the single-block path, batch=512 the multi-tile
    # (2 x 256, megacore-shardable) path.
    for batch in (8, 512):
        xk = jax.random.fold_in(kx, batch)
        x = jax.random.normal(xk, (batch, IN_FEATURES), jnp.float32)
        out = natural_language_scaling_model(x, w1, b1, w2, b2, w3, b3)
        out = jax.block_until_ready(out)
        ref = reference(x)
        assert out.shape == (batch, 1)
        assert jnp.allclose(out, ref, atol=1e-5, rtol=1e-5), f"mismatch at batch={batch}"

    print("KERNEL_OK")
</pallas_src>

<mosaic_0001>
module attributes {stable_mosaic.version = 11 : i64} {
  func.func @_mlp_kernel(%arg0: i32, %arg1: memref<8x50xf32, #tpu.memory_space<vmem>>, %arg2: memref<32x50xf32, #tpu.memory_space<vmem>>, %arg3: memref<32x1xf32, #tpu.memory_space<vmem>>, %arg4: memref<32x32xf32, #tpu.memory_space<vmem>>, %arg5: memref<32x1xf32, #tpu.memory_space<vmem>>, %arg6: memref<32x1xf32, #tpu.memory_space<vmem>>, %arg7: memref<1x1xf32, #tpu.memory_space<smem>>, %arg8: memref<1x8xf32, #tpu.memory_space<vmem>>) attributes {dimension_semantics = [#tpu.dimension_semantics<parallel>], iteration_bounds = array<i64: 1>, scalar_prefetch = 0 : i64, scratch_operands = 0 : i64, tpu.core_type = #tpu.core_type<tc>, window_params = [{transform_indices = @transform_0, window_bounds = array<i64: 8, 50>}, {pipeline_mode = #tpu.pipeline_mode<synchronous>, transform_indices = @transform_1, window_bounds = array<i64: 32, 50>}, {pipeline_mode = #tpu.pipeline_mode<synchronous>, transform_indices = @transform_2, window_bounds = array<i64: 32, 1>}, {pipeline_mode = #tpu.pipeline_mode<synchronous>, transform_indices = @transform_3, window_bounds = array<i64: 32, 32>}, {pipeline_mode = #tpu.pipeline_mode<synchronous>, transform_indices = @transform_4, window_bounds = array<i64: 32, 1>}, {pipeline_mode = #tpu.pipeline_mode<synchronous>, transform_indices = @transform_5, window_bounds = array<i64: 32, 1>}, {transform_indices = @transform_6, window_bounds = array<i64: 1, 1>}, {transform_indices = @transform_7, window_bounds = array<i64: 1, 8>}]} {
    %c0 = arith.constant 0 : index
    %c0_0 = arith.constant 0 : index
    %0 = vector.load %arg2[%c0, %c0_0] : memref<32x50xf32, #tpu.memory_space<vmem>>, vector<32x50xf32>
    %c0_1 = arith.constant 0 : index
    %c0_2 = arith.constant 0 : index
    %1 = vector.load %arg1[%c0_1, %c0_2] : memref<8x50xf32, #tpu.memory_space<vmem>>, vector<8x50xf32>
    %cst = arith.constant dense<0.000000e+00> : vector<32x8xf32>
    %2 = tpu.matmul %0, %1, %cst {dimension_numbers = #tpu.dot_dimension_numbers<[1], [1], [0], [0], [0, 0, 1, 0], [], []>} : vector<32x50xf32>, vector<8x50xf32>, vector<32x8xf32> -> vector<32x8xf32>
    %c0_3 = arith.constant 0 : index
    %c0_4 = arith.constant 0 : index
    %3 = vector.load %arg3[%c0_3, %c0_4] : memref<32x1xf32, #tpu.memory_space<vmem>>, vector<32x1xf32>
    %4 = vector.broadcast %3 : vector<32x1xf32> to vector<32x8xf32>
    %5 = arith.addf %2, %4 : vector<32x8xf32>
    %cst_5 = arith.constant 0.000000e+00 : f32
    %6 = vector.broadcast %cst_5 : f32 to vector<32x8xf32>
    %7 = arith.maximumf %5, %6 : vector<32x8xf32>
    %c0_6 = arith.constant 0 : index
    %c0_7 = arith.constant 0 : index
    %8 = vector.load %arg4[%c0_6, %c0_7] : memref<32x32xf32, #tpu.memory_space<vmem>>, vector<32x32xf32>
    %cst_8 = arith.constant dense<0.000000e+00> : vector<32x8xf32>
    %9 = tpu.matmul %8, %7, %cst_8 {dimension_numbers = #tpu.dot_dimension_numbers<[1], [0], [0], [1], [0, 0, 1, 1], [], []>} : vector<32x32xf32>, vector<32x8xf32>, vector<32x8xf32> -> vector<32x8xf32>
    %c0_9 = arith.constant 0 : index
    %c0_10 = arith.constant 0 : index
    %10 = vector.load %arg5[%c0_9, %c0_10] : memref<32x1xf32, #tpu.memory_space<vmem>>, vector<32x1xf32>
    %11 = vector.broadcast %10 : vector<32x1xf32> to vector<32x8xf32>
    %12 = arith.addf %9, %11 : vector<32x8xf32>
    %cst_11 = arith.constant 0.000000e+00 : f32
    %13 = vector.broadcast %cst_11 : f32 to vector<32x8xf32>
    %14 = arith.maximumf %12, %13 : vector<32x8xf32>
    %c0_12 = arith.constant 0 : index
    %c0_13 = arith.constant 0 : index
    %15 = vector.load %arg6[%c0_12, %c0_13] : memref<32x1xf32, #tpu.memory_space<vmem>>, vector<32x1xf32>
    %16 = vector.broadcast %15 : vector<32x1xf32> to vector<32x8xf32>
    %17 = arith.mulf %14, %16 : vector<32x8xf32>
    %cst_14 = arith.constant dense<0.000000e+00> : vector<8xf32>
    %18 = vector.multi_reduction <add>, %17, %cst_14 [0] : vector<32x8xf32> to vector<8xf32>
    %19 = vector.shape_cast %18 : vector<8xf32> to vector<1x8xf32>
    %c0_15 = arith.constant 0 : index
    %c0_16 = arith.constant 0 : index
    %20 = memref.load %arg7[%c0_15, %c0_16] : memref<1x1xf32, #tpu.memory_space<smem>>
    %21 = vector.broadcast %20 : f32 to vector<1x8xf32>
    %22 = arith.addf %19, %21 : vector<1x8xf32>
    %23 = arith.mulf %22, %22 : vector<1x8xf32>
    %c0_17 = arith.constant 0 : index
    %c0_18 = arith.constant 0 : index
    %24 = vector.load %arg8[%c0_17, %c0_18] : memref<1x8xf32, #tpu.memory_space<vmem>>, vector<1x8xf32>
    tpu.vector_store %arg8[%c0_17, %c0_18], %23 {strides = array<i32>} : memref<1x8xf32, #tpu.memory_space<vmem>>, vector<1x8xf32>,
    return
  }
  func.func @transform_0(%arg0: i32) -> (i32, i32) {
    %c0_i32 = arith.constant 0 : i32
    %c0_i32_0 = arith.constant 0 : i32
    return %arg0, %c0_i32 : i32, i32
  }
  func.func @transform_1(%arg0: i32) -> (i32, i32) {
    %c0_i32 = arith.constant 0 : i32
    %c0_i32_0 = arith.constant 0 : i32
    %c0_i32_1 = arith.constant 0 : i32
    return %c0_i32, %c0_i32_0 : i32, i32
  }
  func.func @transform_2(%arg0: i32) -> (i32, i32) {
    %c0_i32 = arith.constant 0 : i32
    %c0_i32_0 = arith.constant 0 : i32
    %c0_i32_1 = arith.constant 0 : i32
    return %c0_i32, %c0_i32_0 : i32, i32
  }
  func.func @transform_3(%arg0: i32) -> (i32, i32) {
    %c0_i32 = arith.constant 0 : i32
    %c0_i32_0 = arith.constant 0 : i32
    %c0_i32_1 = arith.constant 0 : i32
    return %c0_i32, %c0_i32_0 : i32, i32
  }
  func.func @transform_4(%arg0: i32) -> (i32, i32) {
    %c0_i32 = arith.constant 0 : i32
    %c0_i32_0 = arith.constant 0 : i32
    %c0_i32_1 = arith.constant 0 : i32
    return %c0_i32, %c0_i32_0 : i32, i32
  }
  func.func @transform_5(%arg0: i32) -> (i32, i32) {
    %c0_i32 = arith.constant 0 : i32
    %c0_i32_0 = arith.constant 0 : i32
    %c0_i32_1 = arith.constant 0 : i32
    return %c0_i32, %c0_i32_0 : i32, i32
  }
  func.func @transform_6(%arg0: i32) -> (i32, i32) {
    %c0_i32 = arith.constant 0 : i32
    %c0_i32_0 = arith.constant 0 : i32
    %c0_i32_1 = arith.constant 0 : i32
    return %c0_i32, %c0_i32_0 : i32, i32
  }
  func.func @transform_7(%arg0: i32) -> (i32, i32) {
    %c0_i32 = arith.constant 0 : i32
    %c0_i32_0 = arith.constant 0 : i32
    return %c0_i32, %arg0 : i32, i32
  }
}

</mosaic_0001>

<llo_original>
// kernel: natural_language_scaling_model.1
$region0: #{natural_language_scaling_model.1}
  #allocation0 [shape = 'u32[]', space=smem, size = 0x4, offset = 0x4, fixed_abs, tag = 'smem constant byte address 0x4 - core index']
  #allocation1 [shape = 'u32[72,128]{1,0:T(1,128)}', space=vmem, size = 0x9000, scoped, tag = 'internal scratch']
  #allocation2 [shape = 'f32[1,1]{1,0:T(1,128)S(6)}', space=smem, size = 0x200, scoped, tag = 'scoped memory for natural_language_scaling_model.1']
  %s0 = inlined_call_operand.vmem [shape: f32[8,50], index: 0, kind: input, shape index: {}]
  %s1 = inlined_call_operand.vmem [shape: f32[32,50], index: 1, kind: input, shape index: {}]
  %s2 = inlined_call_operand.vmem [shape: f32[32,1], index: 2, kind: input, shape index: {}]
  %s3 = inlined_call_operand.vmem [shape: f32[32,32], index: 3, kind: input, shape index: {}]
  %s4 = inlined_call_operand.vmem [shape: f32[32,1], index: 4, kind: input, shape index: {}]
  %s5 = inlined_call_operand.vmem [shape: f32[32,1], index: 5, kind: input, shape index: {}]
  %s6 = inlined_call_operand.<no memory space> [shape: f32[1,1], index: 6, kind: input, shape index: {}]
  %s7 = inlined_call_operand.hbm [shape: f32[1,8], index: 7, kind: output, shape index: {}]
  %s8 = sld [smem:[#allocation0]]
  $region38: #{natural_language_scaling_model.1} parent=0
    _
  %s10 = ssub.s32 1, %s8
  %s11 = scalar_select 0, %s10, %s8
  %12 = sst [smem:[#allocation2]] %s6
  $region1: #{natural_language_scaling_model.1} parent=0
    #allocation3 [shape = 'u8[512]{0}', space=vmem, size = 0x400, scoped, tag = 'output window, operand 0, single buffered']
    #allocation4 [shape = 's32[1]{0}', space=sflag, size = 0x4, scoped, tag = 'scoped memory for natural_language_scaling_model.1']
    %13 = vsyncpa [#allocation4], 0
    // Predicated region
    $region2: #{natural_language_scaling_model.1} parent=1 // pred_check
      _
    $region3: #{natural_language_scaling_model.1} parent=1 // pred_check_branch
      %15 = sbr.rel (0) target = $region5
    $region4: #{natural_language_scaling_model.1} parent=1 // pred_region
      _
    $region5: #{natural_language_scaling_model.1} parent=1 // pred_fallthru
      _
    // Predicated region
    $region6: #{natural_language_scaling_model.1} parent=1 // pred_check
      _
    $region7: #{natural_language_scaling_model.1} parent=1 // pred_check_branch
      %17 = sbr.rel (0) target = $region9
    $region8: #{natural_language_scaling_model.1} parent=1 // pred_region
      _
    $region9: #{natural_language_scaling_model.1} parent=1 // pred_fallthru
      _
    // Predicated region
    $region10: #{natural_language_scaling_model.1} parent=1 // pred_check
      _
    $region11: #{natural_language_scaling_model.1} parent=1 // pred_check_branch
      %19 = sbr.rel (0) target = $region13
    $region12: #{natural_language_scaling_model.1} parent=1 // pred_region
      _
    $region13: #{natural_language_scaling_model.1} parent=1 // pred_fallthru
      _
    // Predicated region
    $region14: #{natural_language_scaling_model.1} parent=1 // pred_check
      _
    $region15: #{natural_language_scaling_model.1} parent=1 // pred_check_branch
      %21 = sbr.rel (0) target = $region17
    $region16: #{natural_language_scaling_model.1} parent=1 // pred_region
      _
    $region17: #{natural_language_scaling_model.1} parent=1 // pred_fallthru
      _
    // Predicated region
    $region18: #{natural_language_scaling_model.1} parent=1 // pred_check
      _
    $region19: #{natural_language_scaling_model.1} parent=1 // pred_check_branch
      %23 = sbr.rel (0) target = $region21
    $region20: #{natural_language_scaling_model.1} parent=1 // pred_region
      _
    $region21: #{natural_language_scaling_model.1} parent=1 // pred_fallthru
      _
    // Predicated region
    $region22: #{natural_language_scaling_model.1} parent=1 // pred_check
      _
    $region23: #{natural_language_scaling_model.1} parent=1 // pred_check_branch
      %25 = sbr.rel (0) target = $region25
    $region24: #{natural_language_scaling_model.1} parent=1 // pred_region
      _
    $region25: #{natural_language_scaling_model.1} parent=1 // pred_fallthru
      _
    // Predicated region
    $region26: #{natural_language_scaling_model.1} parent=1 // pred_check
      _
    $region27: #{natural_language_scaling_model.1} parent=1 // pred_check_branch
      %27 = sbr.rel (0) target = $region29
    $region28: #{natural_language_scaling_model.1} parent=1 // pred_region
      _
    $region29: #{natural_language_scaling_model.1} parent=1 // pred_fallthru
      _
    %v28 = vld [vmem:[%s1] sm:$0xff]
    %v29 = vld [vmem:[%s1 + $0x8] sm:$0xff]
    %v30 = vld [vmem:[%s1 + $0x10] sm:$0xff]
    %v31 = vld [vmem:[%s1 + $0x18] sm:$0xff]
    %v32 = vld [vmem:[%s0] sm:$0xff]
    %v33 = vld [vmem:[%s2] sm:$0xff]
    %v34 = vld [vmem:[%s2 + $0x8] sm:$0xff]
    %v35 = vld [vmem:[%s2 + $0x10] sm:$0xff]
    %v36 = vld [vmem:[%s2 + $0x18] sm:$0xff]
    %38 = vset.pattern.permute.xlu0 0
    %39 = vperm.xlu0 %38, %v33
    %v40 = vpop.permute.xlu0 %39
    %43 = vset.pattern.permute.xlu0 0
    %44 = vperm.xlu0 %43, %v34
    %v45 = vpop.permute.xlu0 %44
    %48 = vset.pattern.permute.xlu0 0
    %49 = vperm.xlu0 %48, %v35
    %v50 = vpop.permute.xlu0 %49
    %53 = vset.pattern.permute.xlu0 0
    %54 = vperm.xlu0 %53, %v36
    %v55 = vpop.permute.xlu0 %54
    %vm57 = vcmask 408576
    %v59 = vsel %vm57, %v28, 0
    %v62 = vsel %vm57, %v29, 0
    %v65 = vsel %vm57, %v30, 0
    %v68 = vsel %vm57, %v31, 0
    %v71 = vsel %vm57, %v32, 0
    %73 = vmatpush.xpose.msra.mxu0 0.0
    %74 = vmatpush.xpose.msra.mxu0 0.0
    %75 = vmatpush.xpose.msra.mxu0 0.0
    %76 = vmatpush.xpose.msra.mxu0 0.0
    %77 = vmatpush.xpose.msra.mxu0 0.0
    %78 = vmatpush.xpose.msra.mxu0 0.0
    %79 = vmatpush.xpose.msra.mxu0 0.0
    %80 = vmatpush.xpose.msra.mxu0 0.0
    %81 = vmatpush.xpose.msra.mxu0 0.0
    %82 = vmatpush.xpose.msra.mxu0 0.0
    %83 = vmatpush.xpose.msra.mxu0 0.0
    %84 = vmatpush.xpose.msra.mxu0 0.0
    %85 = vmatpush.xpose.msra.mxu0 0.0
    %86 = vmatpush.xpose.msra.mxu0 0.0
    %87 = vmatpush.xpose.msra.mxu0 0.0
    %88 = vmatpush.xpose.msra.mxu0 %v71
    %89 = vmatmul.f32.gmra.mxu0 %v59
    %v90 = vpop.f32.mrf.mxu0
    %v91 = vadd.f32 %v40, %v90
    %92 = vmatmul.f32.gmra.mxu0 %v62
    %v93 = vpop.f32.mrf.mxu0
    %v94 = vadd.f32 %v45, %v93
    %95 = vmatmul.f32.gmra.mxu0 %v65
    %v96 = vpop.f32.mrf.mxu0
    %v97 = vadd.f32 %v50, %v96
    %98 = vmatmul.f32.gmra.mxu0 %v68
    %v99 = vpop.f32.mrf.mxu0
    %v100 = vadd.f32 %v55, %v99
    %101 = vdwg.mxu0
    %v102 = vmax.f32 %v91, 0.0
    %v103 = vmax.f32 %v94, 0.0
    %v104 = vmax.f32 %v97, 0.0
    %v105 = vmax.f32 %v100, 0.0
    %v106 = vld [vmem:[%s3] sm:$0xff]
    %v107 = vld [vmem:[%s3 + $0x8] sm:$0xff]
    %v108 = vld [vmem:[%s3 + $0x10] sm:$0xff]
    %v109 = vld [vmem:[%s3 + $0x18] sm:$0xff]
    %v110 = vld [vmem:[%s4] sm:$0xff]
    %v111 = vld [vmem:[%s4 + $0x8] sm:$0xff]
    %v112 = vld [vmem:[%s4 + $0x10] sm:$0xff]
    %v113 = vld [vmem:[%s4 + $0x18] sm:$0xff]
    %115 = vset.pattern.permute.xlu0 0
    %116 = vperm.xlu0 %115, %v110
    %v117 = vpop.permute.xlu0 %116
    %120 = vset.pattern.permute.xlu0 0
    %121 = vperm.xlu0 %120, %v111
    %v122 = vpop.permute.xlu0 %121
    %125 = vset.pattern.permute.xlu0 0
    %126 = vperm.xlu0 %125, %v112
    %v127 = vpop.permute.xlu0 %126
    %130 = vset.pattern.permute.xlu0 0
    %131 = vperm.xlu0 %130, %v113
    %v132 = vpop.permute.xlu0 %131
    %vm134 = vcmask 261120
    %v136 = vsel %vm134, %v106, 0
    %v139 = vsel %vm134, %v107, 0
    %v142 = vsel %vm134, %v108, 0
    %v145 = vsel %vm134, %v109, 0
    %147 = vmatpush.msra.mxu0 0.0
    %148 = vmatpush.msra.mxu0 0.0
    %149 = vmatpush.msra.mxu0 0.0
    %150 = vmatpush.msra.mxu0 0.0
    %151 = vmatpush.msra.mxu0 0.0
    %152 = vmatpush.msra.mxu0 0.0
    %153 = vmatpush.msra.mxu0 0.0
    %154 = vmatpush.msra.mxu0 0.0
    %155 = vmatpush.msra.mxu0 0.0
    %156 = vmatpush.msra.mxu0 0.0
    %157 = vmatpush.msra.mxu0 0.0
    %158 = vmatpush.msra.mxu0 0.0
    %159 = vmatpush.msra.mxu0 %v105
    %160 = vmatpush.msra.mxu0 %v104
    %161 = vmatpush.msra.mxu0 %v103
    %162 = vmatpush.msra.mxu0 %v102
    %163 = vmatmul.f32.gmra.mxu0 %v136
    %v164 = vpop.f32.mrf.mxu0
    %v165 = vadd.f32 %v117, %v164
    %166 = vmatmul.f32.gmra.mxu0 %v139
    %v167 = vpop.f32.mrf.mxu0
    %v168 = vadd.f32 %v122, %v167
    %169 = vmatmul.f32.gmra.mxu0 %v142
    %v170 = vpop.f32.mrf.mxu0
    %v171 = vadd.f32 %v127, %v170
    %172 = vmatmul.f32.gmra.mxu0 %v145
    %v173 = vpop.f32.mrf.mxu0
    %v174 = vadd.f32 %v132, %v173
    %175 = vdwg.mxu0
    %v176 = vmax.f32 %v165, 0.0
    %v177 = vmax.f32 %v168, 0.0
    %v178 = vmax.f32 %v171, 0.0
    %v179 = vmax.f32 %v174, 0.0
    %v180 = vld [vmem:[%s5] sm:$0xff]
    %v181 = vld [vmem:[%s5 + $0x8] sm:$0xff]
    %v182 = vld [vmem:[%s5 + $0x10] sm:$0xff]
    %v183 = vld [vmem:[%s5 + $0x18] sm:$0xff]
    %185 = vset.pattern.permute.xlu0 0
    %186 = vperm.xlu0 %185, %v180
    %v187 = vpop.permute.xlu0 %186
    %190 = vset.pattern.permute.xlu0 0
    %191 = vperm.xlu0 %190, %v181
    %v192 = vpop.permute.xlu0 %191
    %195 = vset.pattern.permute.xlu0 0
    %196 = vperm.xlu0 %195, %v182
    %v197 = vpop.permute.xlu0 %196
    %200 = vset.pattern.permute.xlu0 0
    %201 = vperm.xlu0 %200, %v183
    %v202 = vpop.permute.xlu0 %201
    %v204 = vmul.f32 %v176, %v187
    %v205 = vmul.f32 %v177, %v192
    %v206 = vmul.f32 %v178, %v197
    %v207 = vmul.f32 %v179, %v202
    %vm208 = vcmask 64512
    %v209 = vsel %vm208, %v204, 0.0
    %v210 = vsel %vm208, %v205, 0.0
    %v211 = vadd.f32 %v209, %v210
    %v212 = vsel %vm208, %v206, 0.0
    %v213 = vadd.f32 %v211, %v212
    %v214 = vsel %vm208, %v207, 0.0
    %v215 = vadd.f32 %v213, %v214
    %v216 = vrot.slane %v215, 4
    %v217 = vadd.f32 %v215, %v216
    %v218 = vrot.slane %v217, 2
    %v219 = vadd.f32 %v217, %v218
    %v220 = vrot.slane %v219, 1
    %v221 = vadd.f32 %v219, %v220
    %s222 = sld [smem:[#allocation2]]
    %v223 = vstv %s222
    %v224 = vadd.f32 %v221, %v223
    %v225 = vmul.f32 %v224, %v224
    %vm226 = vcmask 57344
    %227 = vst.msk [vmem:[#allocation3] sm:$0x1] %vm226, %v225
    // Predicated region
    $region30: #{natural_language_scaling_model.1} parent=1 // pred_check
      _
    $region31: #{natural_language_scaling_model.1} parent=1 // pred_check_branch
      %229 = sbr.rel (0) target = $region33
    $region32: #{natural_language_scaling_model.1} parent=1 // pred_region
      %231 = vsyncadd [#allocation4], 0
      %s233 = sshll.u32 [#allocation3], 4
      %s234 = int_to_ptr.vmem [resolvable:$true] %s233
      %s235 = sshll.u32 %s7, 4
      %s236 = int_to_ptr.hbm [resolvable:$true] %s235
      %238 = dma.vmem_to_hbm [thread:$0]  %s234, 16, %s236, [#allocation4]
    $region33: #{natural_language_scaling_model.1} parent=1 // pred_fallthru
      _
    // Predicated region
    $region34: #{natural_language_scaling_model.1} parent=1 // pred_check
      _
    $region35: #{natural_language_scaling_model.1} parent=1 // pred_check_branch
      %240 = sbr.rel (0) target = $region37
    $region36: #{natural_language_scaling_model.1} parent=1 // pred_region
      %242 = dma.done [#allocation4], 16
    $region37: #{natural_language_scaling_model.1} parent=1 // pred_fallthru
      _
    %243 = vsyncpa [#allocation4], 1

</llo_original>
